<compile_context>
chip_gen: v7x
topology: tpu7x:2x2x1
jax: 0.10.0
libtpu: 0.0.40
codegen_flags: <defaults>
</compile_context>

<pallas_src>
import functools

import jax
import jax.numpy as jnp
from jax.experimental import pallas as pl
from jax.experimental.pallas import tpu as pltpu

LANE = 128
SUBLANE_F32 = 8
SUBLANE_BF16 = 16


def _round_up(d, m):
    return ((d + m - 1) // m) * m


# ------------------------------ Pallas kernel -------------------------------


def fused_baseline_kernel(a_ref, x_ref, p_ref, w_ref, b_ref, o_ref, z_ref):
    """Entire Baseline forward in one kernel; activations live in VMEM.

    a_ref : [Np, Np]      bf16 dense adjacency A[dst, src] (edge multiplicity)
    x_ref : [Np, Fp]      bf16 node features (zero-padded)
    p_ref : [Gp, Np]      bf16 mean-pool matrix (rows = 1/|graph|)
    w_ref : [L, 2*Fp, Fp] bf16 K-stacked [W_rel; W_root] per layer
                          (last layer pre-folded with the head weight)
    b_ref : [L, 1, Fp]    f32 biases (last layer pre-folded with head bias)
    o_ref : [Gp, Fp]      f32 output slab (column 0 holds the prediction)
    z_ref : [Np, 2*Fp]    bf16 scratch for the K-stacked operand
    """
    nl = w_ref.shape[0]
    fp = x_ref.shape[-1]
    h = x_ref[...]                                   # bf16 [Np, Fp]

    for li in range(nl - 1):                         # conv1..conv3 (+ ReLU)
        # aggregation on MXU with f32 accumulate; a_ref re-read each layer
        aggr = jnp.dot(a_ref[...], h, preferred_element_type=jnp.float32)
        z_ref[:, :fp] = aggr.astype(jnp.bfloat16)    # K-stacked operand
        z_ref[:, fp:] = h
        out = jnp.dot(z_ref[...], w_ref[li], preferred_element_type=jnp.float32)
        out = out + b_ref[li]                        # f32 bias add (VPU)
        h = jnp.maximum(out, 0.0).astype(jnp.bfloat16)

    # conv4 (no ReLU) folded with mean-pool + Linear head:
    #   y = P @ [A@h, h] @ [W_rel4@Wh ; W_root4@Wh] + (b4@Wh + bh)
    aggr = jnp.dot(a_ref[...], h, preferred_element_type=jnp.float32)
    z_ref[:, :fp] = aggr.astype(jnp.bfloat16)
    z_ref[:, fp:] = h
    pz = jnp.dot(p_ref[...], z_ref[...], preferred_element_type=jnp.float32)
    o_ref[...] = (
        jnp.dot(pz.astype(jnp.bfloat16), w_ref[nl - 1],
                preferred_element_type=jnp.float32)
        + b_ref[nl - 1]
    )


# ------------------------------ JAX wrapper ----------------------------------


def _full_spec(shape):
    # whole-array block (no grid); block == full dims satisfies the tiling rule
    return pl.BlockSpec(shape, lambda: (0,) * len(shape))


def _pad2(a, rows, cols, dtype=None):
    out = jnp.pad(a, ((0, rows - a.shape[0]), (0, cols - a.shape[1])))
    return out.astype(dtype) if dtype is not None else out


@functools.partial(jax.jit, static_argnames=("num_graphs",))
def baseline_forward(x, edge_index, batch, params, num_graphs):
    """Full Baseline forward. x: [N, F], edge_index: [2, E] (src; dst), batch: [N]."""
    n, _ = x.shape
    n_pad = _round_up(n, SUBLANE_BF16)          # bf16 sublane multiple, NOT 128
    g_pad = _round_up(num_graphs, SUBLANE_F32)

    # uniform lane padding of all feature dims (keeps the weight slab uniform)
    dims = [d for layer in params["layers"] for d in layer["w_rel"].shape]
    fpad = _round_up(max(dims), LANE)

    # --- glue (same jit): densify edge_index, build mean-pool matrix ----------
    adj = jnp.zeros((n_pad, n_pad), jnp.float32)
    adj = adj.at[edge_index[1], edge_index[0]].add(1.0)       # A[dst, src]
    # bf16 is exact for edge multiplicities <= 256 (simple graphs); keep f32
    # if heavily multi-edged inputs are expected.
    adj_b = adj.astype(jnp.bfloat16)

    one_hot = (batch[None, :] == jnp.arange(num_graphs)[:, None]).astype(jnp.float32)
    counts = jnp.maximum(one_hot.sum(axis=1, keepdims=True), 1.0)
    pool_b = jnp.pad(one_hot / counts,
                     ((0, g_pad - num_graphs), (0, n_pad - n))).astype(jnp.bfloat16)

    x_p = _pad2(x, n_pad, fpad, jnp.bfloat16)

    # --- pack weights/biases into two slabs ------------------------------------
    # last layer pre-folded with the head (no ReLU after conv4):
    #   W4' = W4 @ Wh  (rel and root separately),  b4' = b4 @ Wh + bh
    w_head, b_head = params["w_head"], params["b_head"]
    nl = len(params["layers"])
    w_rows, b_rows = [], []
    for li, layer in enumerate(params["layers"]):
        if li < nl - 1:
            wr, ws, b = layer["w_rel"], layer["w_root"], layer["b_rel"]
        else:
            wr = layer["w_rel"] @ w_head
            ws = layer["w_root"] @ w_head
            b = layer["b_rel"] @ w_head + b_head
        w_rows.append(jnp.concatenate(
            [_pad2(wr, fpad, fpad), _pad2(ws, fpad, fpad)], axis=0))  # [2*Fp, Fp]
        b_rows.append(_pad2(b, 1, fpad))                              # [1, Fp]
    w_slab = jnp.stack(w_rows).astype(jnp.bfloat16)   # [L, 2*Fp, Fp] bf16
    b_slab = jnp.stack(b_rows)                        # [L, 1, Fp]   f32

    inputs = [adj_b, x_p, pool_b, w_slab, b_slab]     # 5 DMA descriptors total

    out = pl.pallas_call(
        fused_baseline_kernel,
        out_shape=jax.ShapeDtypeStruct((g_pad, fpad), jnp.float32),
        in_specs=[_full_spec(a.shape) for a in inputs],
        out_specs=_full_spec((g_pad, fpad)),
        scratch_shapes=[pltpu.VMEM((n_pad, 2 * fpad), jnp.bfloat16)],
        # safe on all generations; re-derive (<= ~56 MiB) before scaling on v7x
        compiler_params=pltpu.CompilerParams(vmem_limit_bytes=32 * 1024 * 1024),
    )(*inputs)
    return out[:num_graphs, :1]                       # lane-dense slab -> [G, 1]


# --------------------------- pure-JAX reference -------------------------------


def reference_forward(x, edge_index, batch, params, num_graphs):
    n = x.shape[0]
    adj = jnp.zeros((n, n), jnp.float32).at[edge_index[1], edge_index[0]].add(1.0)
    h = x
    for li, layer in enumerate(params["layers"]):
        out = adj @ h @ layer["w_rel"] + h @ layer["w_root"] + layer["b_rel"]
        h = jnp.maximum(out, 0.0) if li < 3 else out
    one_hot = (batch[None, :] == jnp.arange(num_graphs)[:, None]).astype(jnp.float32)
    counts = jnp.maximum(one_hot.sum(axis=1, keepdims=True), 1.0)
    pooled = (one_hot / counts) @ h
    return pooled @ params["w_head"] + params["b_head"]


# ----------------------------- parameter setup --------------------------------


def init_params(key, num_features, hidden_dim):
    dims = [
        (num_features, hidden_dim),
        (hidden_dim, 2 * hidden_dim),
        (2 * hidden_dim, 3 * hidden_dim),
        (3 * hidden_dim, hidden_dim),
    ]
    layers = []
    for fin, fout in dims:
        key, k1, k2 = jax.random.split(key, 3)
        scale = 1.0 / jnp.sqrt(jnp.float32(fin))
        layers.append({
            "w_rel": jax.random.uniform(k1, (fin, fout), jnp.float32, -scale, scale),
            "w_root": jax.random.uniform(k2, (fin, fout), jnp.float32, -scale, scale),
            "b_rel": jnp.zeros((1, fout), jnp.float32),
        })
    key, kh = jax.random.split(key)
    scale = 1.0 / jnp.sqrt(jnp.float32(hidden_dim))
    return {
        "layers": layers,
        "w_head": jax.random.uniform(kh, (hidden_dim, 1), jnp.float32, -scale, scale),
        "b_head": jnp.zeros((1, 1), jnp.float32),
    }


# ----------------------------------- main --------------------------------------


if __name__ == "__main__":
    num_features = 8
    hidden_dim = 16
    num_nodes = 16          # two graphs of 8 nodes each
    num_graphs = 2

    key = jax.random.PRNGKey(0)
    kx, kp = jax.random.split(key, 2)

    # node features
    x = jax.random.normal(kx, (num_nodes, num_features), jnp.float32)

    # deterministic small graph: ring edges within each 8-node graph (both directions)
    src, dst = [], []
    for g in range(num_graphs):
        base = g * 8
        for i in range(8):
            a, b = base + i, base + (i + 1) % 8
            src += [a, b]
            dst += [b, a]
    edge_index = jnp.array([src, dst], jnp.int32)                     # [2, 32]
    batch = jnp.repeat(jnp.arange(num_graphs, dtype=jnp.int32), 8)    # [16]

    params = init_params(kp, num_features, hidden_dim)

    out = baseline_forward(x, edge_index, batch, params, num_graphs=num_graphs)
    jax.block_until_ready(out)
    assert out.shape == (num_graphs, 1)

    ref = reference_forward(x, edge_index, batch, params, num_graphs)
    assert jnp.allclose(out, ref, rtol=1e-1, atol=1e-1), "kernel/reference mismatch"

    print("KERNEL_OK")
</pallas_src>

<mosaic_0001>
module attributes {stable_mosaic.version = 11 : i64} {
  func.func private @main(%arg0: i32) attributes {dimension_semantics = [#tpu.dimension_semantics<core_parallel>], iteration_bounds = array<i64: 2>, tpu.core_type = #tpu.core_type<sc_scalar_subcore>, window_params = []} {
    return
  }
}

module attributes {stable_mosaic.version = 11 : i64} {
  func.func private @main(%arg0: i32) attributes {dimension_semantics = [#tpu.dimension_semantics<core_parallel>], iteration_bounds = array<i64: 2>, tpu.core_type = #tpu.core_type<sc_scalar_subcore>, window_params = []} {
    return
  }
}

module attributes {stable_mosaic.version = 11 : i64} {
  func.func @fused_baseline_kernel(%arg0: memref<16x16xbf16, #tpu.memory_space<vmem>>, %arg1: memref<16x128xbf16, #tpu.memory_space<vmem>>, %arg2: memref<8x16xbf16, #tpu.memory_space<vmem>>, %arg3: memref<4x256x128xbf16, #tpu.memory_space<vmem>>, %arg4: memref<4x1x128xf32, #tpu.memory_space<vmem>>, %arg5: memref<8x128xf32, #tpu.memory_space<vmem>>, %arg6: memref<16x256xbf16, #tpu.memory_space<vmem>>) attributes {dimension_semantics = [], scalar_prefetch = 0 : i64, scratch_operands = 1 : i64, tpu.core_type = #tpu.core_type<tc>} {
    %c0 = arith.constant 0 : index
    %c0_0 = arith.constant 0 : index
    %0 = vector.load %arg1[%c0, %c0_0] : memref<16x128xbf16, #tpu.memory_space<vmem>>, vector<16x128xbf16>
    %c0_1 = arith.constant 0 : index
    %c0_2 = arith.constant 0 : index
    %1 = vector.load %arg0[%c0_1, %c0_2] : memref<16x16xbf16, #tpu.memory_space<vmem>>, vector<16x16xbf16>
    %cst = arith.constant dense<0.000000e+00> : vector<16x128xf32>
    %2 = tpu.matmul %1, %0, %cst {dimension_numbers = #tpu.dot_dimension_numbers<[1], [0], [0], [1], [0, 0, 1, 1], [], []>} : vector<16x16xbf16>, vector<16x128xbf16>, vector<16x128xf32> -> vector<16x128xf32>
    %3 = arith.truncf %2 : vector<16x128xf32> to vector<16x128xbf16>
    %c0_3 = arith.constant 0 : index
    %c0_4 = arith.constant 0 : index
    %4 = vector.load %arg6[%c0_3, %c0_4] : memref<16x256xbf16, #tpu.memory_space<vmem>>, vector<16x128xbf16>
    tpu.vector_store %arg6[%c0_3, %c0_4], %3 {strides = array<i32>} : memref<16x256xbf16, #tpu.memory_space<vmem>>, vector<16x128xbf16>,
    %c0_5 = arith.constant 0 : index
    %c128 = arith.constant 128 : index
    %5 = vector.load %arg6[%c0_5, %c128] : memref<16x256xbf16, #tpu.memory_space<vmem>>, vector<16x128xbf16>
    tpu.vector_store %arg6[%c0_5, %c128], %0 {strides = array<i32>} : memref<16x256xbf16, #tpu.memory_space<vmem>>, vector<16x128xbf16>,
    %c0_6 = arith.constant 0 : index
    %c0_7 = arith.constant 0 : index
    %6 = vector.load %arg6[%c0_6, %c0_7] : memref<16x256xbf16, #tpu.memory_space<vmem>>, vector<16x256xbf16>
    %c0_8 = arith.constant 0 : index
    %c0_9 = arith.constant 0 : index
    %c0_10 = arith.constant 0 : index
    %7 = vector.load %arg3[%c0_8, %c0_9, %c0_10] : memref<4x256x128xbf16, #tpu.memory_space<vmem>>, vector<1x256x128xbf16>
    %8 = vector.shape_cast %7 : vector<1x256x128xbf16> to vector<256x128xbf16>
    %cst_11 = arith.constant dense<0.000000e+00> : vector<16x128xf32>
    %9 = tpu.matmul %6, %8, %cst_11 {dimension_numbers = #tpu.dot_dimension_numbers<[1], [0], [0], [1], [0, 0, 1, 1], [], []>} : vector<16x256xbf16>, vector<256x128xbf16>, vector<16x128xf32> -> vector<16x128xf32>
    %c0_12 = arith.constant 0 : index
    %c0_13 = arith.constant 0 : index
    %c0_14 = arith.constant 0 : index
    %10 = vector.load %arg4[%c0_12, %c0_13, %c0_14] : memref<4x1x128xf32, #tpu.memory_space<vmem>>, vector<1x1x128xf32>
    %11 = vector.shape_cast %10 : vector<1x1x128xf32> to vector<1x128xf32>
    %12 = vector.broadcast %11 : vector<1x128xf32> to vector<16x128xf32>
    %13 = arith.addf %9, %12 : vector<16x128xf32>
    %cst_15 = arith.constant 0.000000e+00 : f32
    %14 = vector.broadcast %cst_15 : f32 to vector<16x128xf32>
    %15 = arith.maximumf %13, %14 : vector<16x128xf32>
    %16 = arith.truncf %15 : vector<16x128xf32> to vector<16x128xbf16>
    %c0_16 = arith.constant 0 : index
    %c0_17 = arith.constant 0 : index
    %17 = vector.load %arg0[%c0_16, %c0_17] : memref<16x16xbf16, #tpu.memory_space<vmem>>, vector<16x16xbf16>
    %cst_18 = arith.constant dense<0.000000e+00> : vector<16x128xf32>
    %18 = tpu.matmul %17, %16, %cst_18 {dimension_numbers = #tpu.dot_dimension_numbers<[1], [0], [0], [1], [0, 0, 1, 1], [], []>} : vector<16x16xbf16>, vector<16x128xbf16>, vector<16x128xf32> -> vector<16x128xf32>
    %19 = arith.truncf %18 : vector<16x128xf32> to vector<16x128xbf16>
    %c0_19 = arith.constant 0 : index
    %c0_20 = arith.constant 0 : index
    %20 = vector.load %arg6[%c0_19, %c0_20] : memref<16x256xbf16, #tpu.memory_space<vmem>>, vector<16x128xbf16>
    tpu.vector_store %arg6[%c0_19, %c0_20], %19 {strides = array<i32>} : memref<16x256xbf16, #tpu.memory_space<vmem>>, vector<16x128xbf16>,
    %c0_21 = arith.constant 0 : index
    %c128_22 = arith.constant 128 : index
    %21 = vector.load %arg6[%c0_21, %c128_22] : memref<16x256xbf16, #tpu.memory_space<vmem>>, vector<16x128xbf16>
    tpu.vector_store %arg6[%c0_21, %c128_22], %16 {strides = array<i32>} : memref<16x256xbf16, #tpu.memory_space<vmem>>, vector<16x128xbf16>,
    %c0_23 = arith.constant 0 : index
    %c0_24 = arith.constant 0 : index
    %22 = vector.load %arg6[%c0_23, %c0_24] : memref<16x256xbf16, #tpu.memory_space<vmem>>, vector<16x256xbf16>
    %c1 = arith.constant 1 : index
    %c0_25 = arith.constant 0 : index
    %c0_26 = arith.constant 0 : index
    %23 = vector.load %arg3[%c1, %c0_25, %c0_26] : memref<4x256x128xbf16, #tpu.memory_space<vmem>>, vector<1x256x128xbf16>
    %24 = vector.shape_cast %23 : vector<1x256x128xbf16> to vector<256x128xbf16>
    %cst_27 = arith.constant dense<0.000000e+00> : vector<16x128xf32>
    %25 = tpu.matmul %22, %24, %cst_27 {dimension_numbers = #tpu.dot_dimension_numbers<[1], [0], [0], [1], [0, 0, 1, 1], [], []>} : vector<16x256xbf16>, vector<256x128xbf16>, vector<16x128xf32> -> vector<16x128xf32>
    %c1_28 = arith.constant 1 : index
    %c0_29 = arith.constant 0 : index
    %c0_30 = arith.constant 0 : index
    %26 = vector.load %arg4[%c1_28, %c0_29, %c0_30] : memref<4x1x128xf32, #tpu.memory_space<vmem>>, vector<1x1x128xf32>
    %27 = vector.shape_cast %26 : vector<1x1x128xf32> to vector<1x128xf32>
    %28 = vector.broadcast %27 : vector<1x128xf32> to vector<16x128xf32>
    %29 = arith.addf %25, %28 : vector<16x128xf32>
    %cst_31 = arith.constant 0.000000e+00 : f32
    %30 = vector.broadcast %cst_31 : f32 to vector<16x128xf32>
    %31 = arith.maximumf %29, %30 : vector<16x128xf32>
    %32 = arith.truncf %31 : vector<16x128xf32> to vector<16x128xbf16>
    %c0_32 = arith.constant 0 : index
    %c0_33 = arith.constant 0 : index
    %33 = vector.load %arg0[%c0_32, %c0_33] : memref<16x16xbf16, #tpu.memory_space<vmem>>, vector<16x16xbf16>
    %cst_34 = arith.constant dense<0.000000e+00> : vector<16x128xf32>
    %34 = tpu.matmul %33, %32, %cst_34 {dimension_numbers = #tpu.dot_dimension_numbers<[1], [0], [0], [1], [0, 0, 1, 1], [], []>} : vector<16x16xbf16>, vector<16x128xbf16>, vector<16x128xf32> -> vector<16x128xf32>
    %35 = arith.truncf %34 : vector<16x128xf32> to vector<16x128xbf16>
    %c0_35 = arith.constant 0 : index
    %c0_36 = arith.constant 0 : index
    %36 = vector.load %arg6[%c0_35, %c0_36] : memref<16x256xbf16, #tpu.memory_space<vmem>>, vector<16x128xbf16>
    tpu.vector_store %arg6[%c0_35, %c0_36], %35 {strides = array<i32>} : memref<16x256xbf16, #tpu.memory_space<vmem>>, vector<16x128xbf16>,
    %c0_37 = arith.constant 0 : index
    %c128_38 = arith.constant 128 : index
    %37 = vector.load %arg6[%c0_37, %c128_38] : memref<16x256xbf16, #tpu.memory_space<vmem>>, vector<16x128xbf16>
    tpu.vector_store %arg6[%c0_37, %c128_38], %32 {strides = array<i32>} : memref<16x256xbf16, #tpu.memory_space<vmem>>, vector<16x128xbf16>,
    %c0_39 = arith.constant 0 : index
    %c0_40 = arith.constant 0 : index
    %38 = vector.load %arg6[%c0_39, %c0_40] : memref<16x256xbf16, #tpu.memory_space<vmem>>, vector<16x256xbf16>
    %c2 = arith.constant 2 : index
    %c0_41 = arith.constant 0 : index
    %c0_42 = arith.constant 0 : index
    %39 = vector.load %arg3[%c2, %c0_41, %c0_42] : memref<4x256x128xbf16, #tpu.memory_space<vmem>>, vector<1x256x128xbf16>
    %40 = vector.shape_cast %39 : vector<1x256x128xbf16> to vector<256x128xbf16>
    %cst_43 = arith.constant dense<0.000000e+00> : vector<16x128xf32>
    %41 = tpu.matmul %38, %40, %cst_43 {dimension_numbers = #tpu.dot_dimension_numbers<[1], [0], [0], [1], [0, 0, 1, 1], [], []>} : vector<16x256xbf16>, vector<256x128xbf16>, vector<16x128xf32> -> vector<16x128xf32>
    %c2_44 = arith.constant 2 : index
    %c0_45 = arith.constant 0 : index
    %c0_46 = arith.constant 0 : index
    %42 = vector.load %arg4[%c2_44, %c0_45, %c0_46] : memref<4x1x128xf32, #tpu.memory_space<vmem>>, vector<1x1x128xf32>
    %43 = vector.shape_cast %42 : vector<1x1x128xf32> to vector<1x128xf32>
    %44 = vector.broadcast %43 : vector<1x128xf32> to vector<16x128xf32>
    %45 = arith.addf %41, %44 : vector<16x128xf32>
    %cst_47 = arith.constant 0.000000e+00 : f32
    %46 = vector.broadcast %cst_47 : f32 to vector<16x128xf32>
    %47 = arith.maximumf %45, %46 : vector<16x128xf32>
    %48 = arith.truncf %47 : vector<16x128xf32> to vector<16x128xbf16>
    %c0_48 = arith.constant 0 : index
    %c0_49 = arith.constant 0 : index
    %49 = vector.load %arg0[%c0_48, %c0_49] : memref<16x16xbf16, #tpu.memory_space<vmem>>, vector<16x16xbf16>
    %cst_50 = arith.constant dense<0.000000e+00> : vector<16x128xf32>
    %50 = tpu.matmul %49, %48, %cst_50 {dimension_numbers = #tpu.dot_dimension_numbers<[1], [0], [0], [1], [0, 0, 1, 1], [], []>} : vector<16x16xbf16>, vector<16x128xbf16>, vector<16x128xf32> -> vector<16x128xf32>
    %51 = arith.truncf %50 : vector<16x128xf32> to vector<16x128xbf16>
    %c0_51 = arith.constant 0 : index
    %c0_52 = arith.constant 0 : index
    %52 = vector.load %arg6[%c0_51, %c0_52] : memref<16x256xbf16, #tpu.memory_space<vmem>>, vector<16x128xbf16>
    tpu.vector_store %arg6[%c0_51, %c0_52], %51 {strides = array<i32>} : memref<16x256xbf16, #tpu.memory_space<vmem>>, vector<16x128xbf16>,
    %c0_53 = arith.constant 0 : index
    %c128_54 = arith.constant 128 : index
    %53 = vector.load %arg6[%c0_53, %c128_54] : memref<16x256xbf16, #tpu.memory_space<vmem>>, vector<16x128xbf16>
    tpu.vector_store %arg6[%c0_53, %c128_54], %48 {strides = array<i32>} : memref<16x256xbf16, #tpu.memory_space<vmem>>, vector<16x128xbf16>,
    %c0_55 = arith.constant 0 : index
    %c0_56 = arith.constant 0 : index
    %54 = vector.load %arg2[%c0_55, %c0_56] : memref<8x16xbf16, #tpu.memory_space<vmem>>, vector<8x16xbf16>
    %c0_57 = arith.constant 0 : index
    %c0_58 = arith.constant 0 : index
    %55 = vector.load %arg6[%c0_57, %c0_58] : memref<16x256xbf16, #tpu.memory_space<vmem>>, vector<16x256xbf16>
    %cst_59 = arith.constant dense<0.000000e+00> : vector<8x256xf32>
    %56 = tpu.matmul %54, %55, %cst_59 {dimension_numbers = #tpu.dot_dimension_numbers<[1], [0], [0], [1], [0, 0, 1, 1], [], []>} : vector<8x16xbf16>, vector<16x256xbf16>, vector<8x256xf32> -> vector<8x256xf32>
    %57 = arith.truncf %56 : vector<8x256xf32> to vector<8x256xbf16>
    %c3 = arith.constant 3 : index
    %c0_60 = arith.constant 0 : index
    %c0_61 = arith.constant 0 : index
    %58 = vector.load %arg3[%c3, %c0_60, %c0_61] : memref<4x256x128xbf16, #tpu.memory_space<vmem>>, vector<1x256x128xbf16>
    %59 = vector.shape_cast %58 : vector<1x256x128xbf16> to vector<256x128xbf16>
    %cst_62 = arith.constant dense<0.000000e+00> : vector<8x128xf32>
    %60 = tpu.matmul %57, %59, %cst_62 {dimension_numbers = #tpu.dot_dimension_numbers<[1], [0], [0], [1], [0, 0, 1, 1], [], []>} : vector<8x256xbf16>, vector<256x128xbf16>, vector<8x128xf32> -> vector<8x128xf32>
    %c3_63 = arith.constant 3 : index
    %c0_64 = arith.constant 0 : index
    %c0_65 = arith.constant 0 : index
    %61 = vector.load %arg4[%c3_63, %c0_64, %c0_65] : memref<4x1x128xf32, #tpu.memory_space<vmem>>, vector<1x1x128xf32>
    %62 = vector.shape_cast %61 : vector<1x1x128xf32> to vector<1x128xf32>
    %63 = vector.broadcast %62 : vector<1x128xf32> to vector<8x128xf32>
    %64 = arith.addf %60, %63 : vector<8x128xf32>
    %c0_66 = arith.constant 0 : index
    %c0_67 = arith.constant 0 : index
    %65 = vector.load %arg5[%c0_66, %c0_67] : memref<8x128xf32, #tpu.memory_space<vmem>>, vector<8x128xf32>
    tpu.vector_store %arg5[%c0_66, %c0_67], %64 {strides = array<i32>} : memref<8x128xf32, #tpu.memory_space<vmem>>, vector<8x128xf32>,
    return
  }
}

</mosaic_0001>

<llo_original>
// kernel: baseline_forward.1
$region0: #{baseline_forward.1}
  #allocation0 [shape = 'u32[]', space=smem, size = 0x4, offset = 0x4, fixed_abs, tag = 'smem constant byte address 0x4 - core index']
  #allocation1 [shape = 'u32[144,128]{1,0:T(1,128)}', space=vmem, size = 0x12000, scoped, tag = 'internal scratch']
  #allocation2 [shape = 'bf16[16,256]{1,0:T(16,128)(2,1)}', space=vmem, size = 0x2000, scoped, tag = 'scratch operand']
  %s0 = inlined_call_operand.vmem [shape: bf16[16,16], index: 0, kind: input, shape index: {}]
  %s1 = inlined_call_operand.vmem [shape: bf16[16,128], index: 1, kind: input, shape index: {}]
  %s2 = inlined_call_operand.vmem [shape: bf16[8,16], index: 2, kind: input, shape index: {}]
  %s3 = inlined_call_operand.vmem [shape: bf16[4,256,128], index: 3, kind: input, shape index: {}]
  %s4 = inlined_call_operand.vmem [shape: f32[4,1,128], index: 4, kind: input, shape index: {}]
  %s5 = inlined_call_operand.vmem [shape: f32[8,128], index: 5, kind: output, shape index: {}]
  %s6 = sld [smem:[#allocation0]]
  $region30: #{baseline_forward.1} parent=0
    _
  %s8 = ssub.s32 1, %s6
  %s9 = scalar_select 0, %s8, %s6
  // Predicated region
  $region2: #{baseline_forward.1} parent=0 // pred_check
    _
  $region3: #{baseline_forward.1} parent=0 // pred_check_branch
    %11 = sbr.rel (0) target = $region5
  $region4: #{baseline_forward.1} parent=0 // pred_region
    _
  $region5: #{baseline_forward.1} parent=0 // pred_fallthru
    _
  // Predicated region
  $region6: #{baseline_forward.1} parent=0 // pred_check
    _
  $region7: #{baseline_forward.1} parent=0 // pred_check_branch
    %13 = sbr.rel (0) target = $region9
  $region8: #{baseline_forward.1} parent=0 // pred_region
    _
  $region9: #{baseline_forward.1} parent=0 // pred_fallthru
    _
  // Predicated region
  $region10: #{baseline_forward.1} parent=0 // pred_check
    _
  $region11: #{baseline_forward.1} parent=0 // pred_check_branch
    %15 = sbr.rel (0) target = $region13
  $region12: #{baseline_forward.1} parent=0 // pred_region
    _
  $region13: #{baseline_forward.1} parent=0 // pred_fallthru
    _
  // Predicated region
  $region14: #{baseline_forward.1} parent=0 // pred_check
    _
  $region15: #{baseline_forward.1} parent=0 // pred_check_branch
    %17 = sbr.rel (0) target = $region17
  $region16: #{baseline_forward.1} parent=0 // pred_region
    _
  $region17: #{baseline_forward.1} parent=0 // pred_fallthru
    _
  // Predicated region
  $region18: #{baseline_forward.1} parent=0 // pred_check
    _
  $region19: #{baseline_forward.1} parent=0 // pred_check_branch
    %19 = sbr.rel (0) target = $region21
  $region20: #{baseline_forward.1} parent=0 // pred_region
    _
  $region21: #{baseline_forward.1} parent=0 // pred_fallthru
    _
  %v21 = vld [vmem:[%s1] sm:$0xf]
  %v22 = vld [vmem:[%s1 + $0x4] sm:$0xf]
  %v23 = vld [vmem:[%s0] sm:$0xf]
  %v24 = vld [vmem:[%s0 + $0x4] sm:$0xf]
  %v27 = vunpack.c.l.b16 %v23
  %v28 = vunpack.c.l.b16 %v24
  %v29 = vpack.c.b16 %v28, %v27
  %v32 = vunpack.c.l.b16 %v21
  %v33 = vunpack.c.l.b16 %v22
  %v34 = vpack.c.b16 %v33, %v32
  %vm36 = vcmask 130048
  %v38 = vsel %vm36, %v29, 0
  %40 = vmatprep.subr.bf16.mxu0 0
  %41 = vmatpush1.bf16.msra.mxu0 %v34
  %42 = vmatprep.subr.bf16.mxu0 0
  %43 = vmatpush1.bf16.msra.mxu0 0
  %44 = vmatprep.subr.bf16.mxu0 0
  %45 = vmatpush1.bf16.msra.mxu0 0
  %46 = vmatprep.subr.bf16.mxu0 0
  %47 = vmatpush1.bf16.msra.mxu0 0
  %48 = vmatprep.subr.bf16.mxu0 0
  %49 = vmatpush1.bf16.msra.mxu0 0
  %50 = vmatprep.subr.bf16.mxu0 0
  %51 = vmatpush1.bf16.msra.mxu0 0
  %52 = vmatprep.subr.bf16.mxu0 0
  %53 = vmatpush1.bf16.msra.mxu0 0
  %54 = vmatprep.subr.bf16.mxu0 0
  %55 = vmatpush1.bf16.msra.mxu0 0
  %56 = vmatprep.subr.bf16.mxu0 0
  %57 = vmatpush1.bf16.msra.mxu0 0
  %58 = vmatprep.subr.bf16.mxu0 0
  %59 = vmatpush1.bf16.msra.mxu0 0
  %60 = vmatprep.subr.bf16.mxu0 0
  %61 = vmatpush1.bf16.msra.mxu0 0
  %62 = vmatprep.subr.bf16.mxu0 0
  %63 = vmatpush1.bf16.msra.mxu0 0
  %64 = vmatprep.subr.bf16.mxu0 0
  %65 = vmatpush1.bf16.msra.mxu0 0
  %66 = vmatprep.subr.bf16.mxu0 0
  %67 = vmatpush1.bf16.msra.mxu0 0
  %68 = vmatprep.subr.bf16.mxu0 0
  %69 = vmatpush1.bf16.msra.mxu0 0
  %70 = vmatprep.subr.bf16.mxu0 0
  %71 = vmatpush1.bf16.msra.mxu0 0
  %72 = vmatprep.mubr.bf16.mxu0 0
  %73 = vmatmul.mubr.bf16.gmra.mrb[0].mxu0 %v38
  %v74 = vpop.f32.mrb[0].mxu0
  %v75 = vadd.f32 0.0, %v74
  %v76 = vpop.f32.mrb[0].mxu0
  %v77 = vpop.f32.mrb[0].mxu0
  %v78 = vadd.f32 0.0, %v77
  %v79 = vpop.f32.mrb[0].mxu0
  %80 = vdwg.mxu0
  %v81 = vpack.c.bf16 %v78, %v75
  %82 = vst [vmem:[#allocation2] sm:$0xff] %v81
  %83 = vst [vmem:[#allocation2 + $0x8] sm:$0xff] %v34
  %v84 = vld [vmem:[#allocation2] sm:$0xff]
  %v85 = vld [vmem:[#allocation2 + $0x8] sm:$0xff]
  %v86 = vld [vmem:[%s3] sm:$0xf]
  %v87 = vld [vmem:[%s3 + $0x4] sm:$0xf]
  %v88 = vld [vmem:[%s3 + $0x8] sm:$0xf]
  %v89 = vld [vmem:[%s3 + $0xc] sm:$0xf]
  %v90 = vld [vmem:[%s3 + $0x10] sm:$0xf]
  %v91 = vld [vmem:[%s3 + $0x14] sm:$0xf]
  %v92 = vld [vmem:[%s3 + $0x18] sm:$0xf]
  %v93 = vld [vmem:[%s3 + $0x1c] sm:$0xf]
  %v94 = vld [vmem:[%s3 + $0x20] sm:$0xf]
  %v95 = vld [vmem:[%s3 + $0x24] sm:$0xf]
  %v96 = vld [vmem:[%s3 + $0x28] sm:$0xf]
  %v97 = vld [vmem:[%s3 + $0x2c] sm:$0xf]
  %v98 = vld [vmem:[%s3 + $0x30] sm:$0xf]
  %v99 = vld [vmem:[%s3 + $0x34] sm:$0xf]
  %v100 = vld [vmem:[%s3 + $0x38] sm:$0xf]
  %v101 = vld [vmem:[%s3 + $0x3c] sm:$0xf]
  %v102 = vld [vmem:[%s3 + $0x40] sm:$0xf]
  %v103 = vld [vmem:[%s3 + $0x44] sm:$0xf]
  %v104 = vld [vmem:[%s3 + $0x48] sm:$0xf]
  %v105 = vld [vmem:[%s3 + $0x4c] sm:$0xf]
  %v106 = vld [vmem:[%s3 + $0x50] sm:$0xf]
  %v107 = vld [vmem:[%s3 + $0x54] sm:$0xf]
  %v108 = vld [vmem:[%s3 + $0x58] sm:$0xf]
  %v109 = vld [vmem:[%s3 + $0x5c] sm:$0xf]
  %v110 = vld [vmem:[%s3 + $0x60] sm:$0xf]
  %v111 = vld [vmem:[%s3 + $0x64] sm:$0xf]
  %v112 = vld [vmem:[%s3 + $0x68] sm:$0xf]
  %v113 = vld [vmem:[%s3 + $0x6c] sm:$0xf]
  %v114 = vld [vmem:[%s3 + $0x70] sm:$0xf]
  %v115 = vld [vmem:[%s3 + $0x74] sm:$0xf]
  %v116 = vld [vmem:[%s3 + $0x78] sm:$0xf]
  %v117 = vld [vmem:[%s3 + $0x7c] sm:$0xf]
  %v118 = vld [vmem:[%s4] sm:$0x1]
  %v120 = vlaneseq
  %v121 = vshrl.u32 %v120, 7
  %v122 = vsub.s32 0, %v121
  %v123 = vrot.slane %v118, %v122
  %v157 = vunpack.c.l.b16 %v86
  %v158 = vunpack.c.l.b16 %v87
  %v159 = vunpack.c.l.b16 %v88
  %v160 = vunpack.c.l.b16 %v89
  %v161 = vunpack.c.l.b16 %v90
  %v162 = vunpack.c.l.b16 %v91
  %v163 = vunpack.c.l.b16 %v92
  %v164 = vunpack.c.l.b16 %v93
  %v165 = vunpack.c.l.b16 %v94
  %v166 = vunpack.c.l.b16 %v95
  %v167 = vunpack.c.l.b16 %v96
  %v168 = vunpack.c.l.b16 %v97
  %v169 = vunpack.c.l.b16 %v98
  %v170 = vunpack.c.l.b16 %v99
  %v171 = vunpack.c.l.b16 %v100
  %v172 = vunpack.c.l.b16 %v101
  %v173 = vunpack.c.l.b16 %v102
  %v174 = vunpack.c.l.b16 %v103
  %v175 = vunpack.c.l.b16 %v104
  %v176 = vunpack.c.l.b16 %v105
  %v177 = vunpack.c.l.b16 %v106
  %v178 = vunpack.c.l.b16 %v107
  %v179 = vunpack.c.l.b16 %v108
  %v180 = vunpack.c.l.b16 %v109
  %v181 = vunpack.c.l.b16 %v110
  %v182 = vunpack.c.l.b16 %v111
  %v183 = vunpack.c.l.b16 %v112
  %v184 = vunpack.c.l.b16 %v113
  %v185 = vunpack.c.l.b16 %v114
  %v186 = vunpack.c.l.b16 %v115
  %v187 = vunpack.c.l.b16 %v116
  %v188 = vunpack.c.l.b16 %v117
  %v189 = vpack.c.b16 %v158, %v157
  %v190 = vpack.c.b16 %v160, %v159
  %v191 = vpack.c.b16 %v162, %v161
  %v192 = vpack.c.b16 %v164, %v163
  %v193 = vpack.c.b16 %v166, %v165
  %v194 = vpack.c.b16 %v168, %v167
  %v195 = vpack.c.b16 %v170, %v169
  %v196 = vpack.c.b16 %v172, %v171
  %v197 = vpack.c.b16 %v174, %v173
  %v198 = vpack.c.b16 %v176, %v175
  %v199 = vpack.c.b16 %v178, %v177
  %v200 = vpack.c.b16 %v180, %v179
  %v201 = vpack.c.b16 %v182, %v181
  %v202 = vpack.c.b16 %v184, %v183
  %v203 = vpack.c.b16 %v186, %v185
  %v204 = vpack.c.b16 %v188, %v187
  %221 = vmatprep.subr.bf16.mxu0 0
  %222 = vmatpush1.bf16.msra.mxu0 %v189
  %223 = vmatprep.subr.bf16.mxu0 0
  %224 = vmatpush1.bf16.msra.mxu0 %v190
  %225 = vmatprep.subr.bf16.mxu0 0
  %226 = vmatpush1.bf16.msra.mxu0 %v191
  %227 = vmatprep.subr.bf16.mxu0 0
  %228 = vmatpush1.bf16.msra.mxu0 %v192
  %229 = vmatprep.subr.bf16.mxu0 0
  %230 = vmatpush1.bf16.msra.mxu0 %v193
  %231 = vmatprep.subr.bf16.mxu0 0
  %232 = vmatpush1.bf16.msra.mxu0 %v194
  %233 = vmatprep.subr.bf16.mxu0 0
  %234 = vmatpush1.bf16.msra.mxu0 %v195
  %235 = vmatprep.subr.bf16.mxu0 0
  %236 = vmatpush1.bf16.msra.mxu0 %v196
  %237 = vmatprep.subr.bf16.mxu0 0
  %238 = vmatpush1.bf16.msra.mxu0 %v197
  %239 = vmatprep.subr.bf16.mxu0 0
  %240 = vmatpush1.bf16.msra.mxu0 %v198
  %241 = vmatprep.subr.bf16.mxu0 0
  %242 = vmatpush1.bf16.msra.mxu0 %v199
  %243 = vmatprep.subr.bf16.mxu0 0
  %244 = vmatpush1.bf16.msra.mxu0 %v200
  %245 = vmatprep.subr.bf16.mxu0 0
  %246 = vmatpush1.bf16.msra.mxu0 %v201
  %247 = vmatprep.subr.bf16.mxu0 0
  %248 = vmatpush1.bf16.msra.mxu0 %v202
  %249 = vmatprep.subr.bf16.mxu0 0
  %250 = vmatpush1.bf16.msra.mxu0 %v203
  %251 = vmatprep.subr.bf16.mxu0 0
  %252 = vmatpush1.bf16.msra.mxu0 %v204
  %253 = vmatprep.mubr.bf16.mxu0 %v85
  %254 = vmatmul.mubr.bf16.gmra.mrb[0].mxu0 %v84
  %v255 = vpop.f32.mrb[0].mxu0
  %v256 = vadd.f32 %v123, %v255
  %v257 = vpop.f32.mrb[0].mxu0
  %v258 = vpop.f32.mrb[0].mxu0
  %v259 = vadd.f32 %v123, %v258
  %v260 = vpop.f32.mrb[0].mxu0
  %261 = vdwg.mxu0
  %v262 = vmax.f32 %v256, 0.0
  %v263 = vmax.f32 %v259, 0.0
  %v264 = vpack.c.bf16 %v263, %v262
  %v265 = vld [vmem:[%s0] sm:$0xf]
  %v266 = vld [vmem:[%s0 + $0x4] sm:$0xf]
  %v269 = vunpack.c.l.b16 %v265
  %v270 = vunpack.c.l.b16 %v266
  %v271 = vpack.c.b16 %v270, %v269
  %v273 = vsel %vm36, %v271, 0
  %275 = vmatprep.subr.bf16.mxu0 0
  %276 = vmatpush1.bf16.msra.mxu0 %v264
  %277 = vmatprep.subr.bf16.mxu0 0
  %278 = vmatpush1.bf16.msra.mxu0 0
  %279 = vmatprep.subr.bf16.mxu0 0
  %280 = vmatpush1.bf16.msra.mxu0 0
  %281 = vmatprep.subr.bf16.mxu0 0
  %282 = vmatpush1.bf16.msra.mxu0 0
  %283 = vmatprep.subr.bf16.mxu0 0
  %284 = vmatpush1.bf16.msra.mxu0 0
  %285 = vmatprep.subr.bf16.mxu0 0
  %286 = vmatpush1.bf16.msra.mxu0 0
  %287 = vmatprep.subr.bf16.mxu0 0
  %288 = vmatpush1.bf16.msra.mxu0 0
  %289 = vmatprep.subr.bf16.mxu0 0
  %290 = vmatpush1.bf16.msra.mxu0 0
  %291 = vmatprep.subr.bf16.mxu0 0
  %292 = vmatpush1.bf16.msra.mxu0 0
  %293 = vmatprep.subr.bf16.mxu0 0
  %294 = vmatpush1.bf16.msra.mxu0 0
  %295 = vmatprep.subr.bf16.mxu0 0
  %296 = vmatpush1.bf16.msra.mxu0 0
  %297 = vmatprep.subr.bf16.mxu0 0
  %298 = vmatpush1.bf16.msra.mxu0 0
  %299 = vmatprep.subr.bf16.mxu0 0
  %300 = vmatpush1.bf16.msra.mxu0 0
  %301 = vmatprep.subr.bf16.mxu0 0
  %302 = vmatpush1.bf16.msra.mxu0 0
  %303 = vmatprep.subr.bf16.mxu0 0
  %304 = vmatpush1.bf16.msra.mxu0 0
  %305 = vmatprep.subr.bf16.mxu0 0
  %306 = vmatpush1.bf16.msra.mxu0 0
  %307 = vmatprep.mubr.bf16.mxu0 0
  %308 = vmatmul.mubr.bf16.gmra.mrb[0].mxu0 %v273
  %v309 = vpop.f32.mrb[0].mxu0
  %v310 = vadd.f32 0.0, %v309
  %v311 = vpop.f32.mrb[0].mxu0
  %v312 = vpop.f32.mrb[0].mxu0
  %v313 = vadd.f32 0.0, %v312
  %v314 = vpop.f32.mrb[0].mxu0
  %315 = vdwg.mxu0
  %v316 = vpack.c.bf16 %v313, %v310
  %317 = vst [vmem:[#allocation2] sm:$0xff] %v316
  %318 = vst [vmem:[#allocation2 + $0x8] sm:$0xff] %v264
  %v319 = vld [vmem:[#allocation2] sm:$0xff]
  %v320 = vld [vmem:[#allocation2 + $0x8] sm:$0xff]
  %s321 = scalar_lea.vmem %s3, 128
  %v322 = vld [vmem:[%s321] sm:$0xf]
  %v323 = vld [vmem:[%s321 + $0x4] sm:$0xf]
  %v324 = vld [vmem:[%s321 + $0x8] sm:$0xf]
  %v325 = vld [vmem:[%s321 + $0xc] sm:$0xf]
  %v326 = vld [vmem:[%s321 + $0x10] sm:$0xf]
  %v327 = vld [vmem:[%s321 + $0x14] sm:$0xf]
  %v328 = vld [vmem:[%s321 + $0x18] sm:$0xf]
  %v329 = vld [vmem:[%s321 + $0x1c] sm:$0xf]
  %v330 = vld [vmem:[%s321 + $0x20] sm:$0xf]
  %v331 = vld [vmem:[%s321 + $0x24] sm:$0xf]
  %v332 = vld [vmem:[%s321 + $0x28] sm:$0xf]
  %v333 = vld [vmem:[%s321 + $0x2c] sm:$0xf]
  %v334 = vld [vmem:[%s321 + $0x30] sm:$0xf]
  %v335 = vld [vmem:[%s321 + $0x34] sm:$0xf]
  %v336 = vld [vmem:[%s321 + $0x38] sm:$0xf]
  %v337 = vld [vmem:[%s321 + $0x3c] sm:$0xf]
  %v338 = vld [vmem:[%s321 + $0x40] sm:$0xf]
  %v339 = vld [vmem:[%s321 + $0x44] sm:$0xf]
  %v340 = vld [vmem:[%s321 + $0x48] sm:$0xf]
  %v341 = vld [vmem:[%s321 + $0x4c] sm:$0xf]
  %v342 = vld [vmem:[%s321 + $0x50] sm:$0xf]
  %v343 = vld [vmem:[%s321 + $0x54] sm:$0xf]
  %v344 = vld [vmem:[%s321 + $0x58] sm:$0xf]
  %v345 = vld [vmem:[%s321 + $0x5c] sm:$0xf]
  %v346 = vld [vmem:[%s321 + $0x60] sm:$0xf]
  %v347 = vld [vmem:[%s321 + $0x64] sm:$0xf]
  %v348 = vld [vmem:[%s321 + $0x68] sm:$0xf]
  %v349 = vld [vmem:[%s321 + $0x6c] sm:$0xf]
  %v350 = vld [vmem:[%s321 + $0x70] sm:$0xf]
  %v351 = vld [vmem:[%s321 + $0x74] sm:$0xf]
  %v352 = vld [vmem:[%s321 + $0x78] sm:$0xf]
  %v353 = vld [vmem:[%s321 + $0x7c] sm:$0xf]
  %s354 = scalar_lea.vmem %s4, 1
  %v355 = vld [vmem:[%s354] sm:$0x1]
  %v357 = vlaneseq
  %v358 = vshrl.u32 %v357, 7
  %v359 = vsub.s32 0, %v358
  %v360 = vrot.slane %v355, %v359
  %v394 = vunpack.c.l.b16 %v322
  %v395 = vunpack.c.l.b16 %v323
  %v396 = vunpack.c.l.b16 %v324
  %v397 = vunpack.c.l.b16 %v325
  %v398 = vunpack.c.l.b16 %v326
  %v399 = vunpack.c.l.b16 %v327
  %v400 = vunpack.c.l.b16 %v328
  %v401 = vunpack.c.l.b16 %v329
  %v402 = vunpack.c.l.b16 %v330
  %v403 = vunpack.c.l.b16 %v331
  %v404 = vunpack.c.l.b16 %v332
  %v405 = vunpack.c.l.b16 %v333
  %v406 = vunpack.c.l.b16 %v334
  %v407 = vunpack.c.l.b16 %v335
  %v408 = vunpack.c.l.b16 %v336
  %v409 = vunpack.c.l.b16 %v337
  %v410 = vunpack.c.l.b16 %v338
  %v411 = vunpack.c.l.b16 %v339
  %v412 = vunpack.c.l.b16 %v340
  %v413 = vunpack.c.l.b16 %v341
  %v414 = vunpack.c.l.b16 %v342
  %v415 = vunpack.c.l.b16 %v343
  %v416 = vunpack.c.l.b16 %v344
  %v417 = vunpack.c.l.b16 %v345
  %v418 = vunpack.c.l.b16 %v346
  %v419 = vunpack.c.l.b16 %v347
  %v420 = vunpack.c.l.b16 %v348
  %v421 = vunpack.c.l.b16 %v349
  %v422 = vunpack.c.l.b16 %v350
  %v423 = vunpack.c.l.b16 %v351
  %v424 = vunpack.c.l.b16 %v352
  %v425 = vunpack.c.l.b16 %v353
  %v426 = vpack.c.b16 %v395, %v394
  %v427 = vpack.c.b16 %v397, %v396
  %v428 = vpack.c.b16 %v399, %v398
  %v429 = vpack.c.b16 %v401, %v400
  %v430 = vpack.c.b16 %v403, %v402
  %v431 = vpack.c.b16 %v405, %v404
  %v432 = vpack.c.b16 %v407, %v406
  %v433 = vpack.c.b16 %v409, %v408
  %v434 = vpack.c.b16 %v411, %v410
  %v435 = vpack.c.b16 %v413, %v412
  %v436 = vpack.c.b16 %v415, %v414
  %v437 = vpack.c.b16 %v417, %v416
  %v438 = vpack.c.b16 %v419, %v418
  %v439 = vpack.c.b16 %v421, %v420
  %v440 = vpack.c.b16 %v423, %v422
  %v441 = vpack.c.b16 %v425, %v424
  %458 = vmatprep.subr.bf16.mxu0 0
  %459 = vmatpush1.bf16.msra.mxu0 %v426
  %460 = vmatprep.subr.bf16.mxu0 0
  %461 = vmatpush1.bf16.msra.mxu0 %v427
  %462 = vmatprep.subr.bf16.mxu0 0
  %463 = vmatpush1.bf16.msra.mxu0 %v428
  %464 = vmatprep.subr.bf16.mxu0 0
  %465 = vmatpush1.bf16.msra.mxu0 %v429
  %466 = vmatprep.subr.bf16.mxu0 0
  %467 = vmatpush1.bf16.msra.mxu0 %v430
  %468 = vmatprep.subr.bf16.mxu0 0
  %469 = vmatpush1.bf16.msra.mxu0 %v431
  %470 = vmatprep.subr.bf16.mxu0 0
  %471 = vmatpush1.bf16.msra.mxu0 %v432
  %472 = vmatprep.subr.bf16.mxu0 0
  %473 = vmatpush1.bf16.msra.mxu0 %v433
  %474 = vmatprep.subr.bf16.mxu0 0
  %475 = vmatpush1.bf16.msra.mxu0 %v434
  %476 = vmatprep.subr.bf16.mxu0 0
  %477 = vmatpush1.bf16.msra.mxu0 %v435
  %478 = vmatprep.subr.bf16.mxu0 0
  %479 = vmatpush1.bf16.msra.mxu0 %v436
  %480 = vmatprep.subr.bf16.mxu0 0
  %481 = vmatpush1.bf16.msra.mxu0 %v437
  %482 = vmatprep.subr.bf16.mxu0 0
  %483 = vmatpush1.bf16.msra.mxu0 %v438
  %484 = vmatprep.subr.bf16.mxu0 0
  %485 = vmatpush1.bf16.msra.mxu0 %v439
  %486 = vmatprep.subr.bf16.mxu0 0
  %487 = vmatpush1.bf16.msra.mxu0 %v440
  %488 = vmatprep.subr.bf16.mxu0 0
  %489 = vmatpush1.bf16.msra.mxu0 %v441
  %490 = vmatprep.mubr.bf16.mxu0 %v320
  %491 = vmatmul.mubr.bf16.gmra.mrb[0].mxu0 %v319
  %v492 = vpop.f32.mrb[0].mxu0
  %v493 = vadd.f32 %v360, %v492
  %v494 = vpop.f32.mrb[0].mxu0
  %v495 = vpop.f32.mrb[0].mxu0
  %v496 = vadd.f32 %v360, %v495
  %v497 = vpop.f32.mrb[0].mxu0
  %498 = vdwg.mxu0
  %v499 = vmax.f32 %v493, 0.0
  %v500 = vmax.f32 %v496, 0.0
  %v501 = vpack.c.bf16 %v500, %v499
  %v502 = vld [vmem:[%s0] sm:$0xf]
  %v503 = vld [vmem:[%s0 + $0x4] sm:$0xf]
  %v506 = vunpack.c.l.b16 %v502
  %v507 = vunpack.c.l.b16 %v503
  %v508 = vpack.c.b16 %v507, %v506
  %v510 = vsel %vm36, %v508, 0
  %512 = vmatprep.subr.bf16.mxu0 0
  %513 = vmatpush1.bf16.msra.mxu0 %v501
  %514 = vmatprep.subr.bf16.mxu0 0
  %515 = vmatpush1.bf16.msra.mxu0 0
  %516 = vmatprep.subr.bf16.mxu0 0
  %517 = vmatpush1.bf16.msra.mxu0 0
  %518 = vmatprep.subr.bf16.mxu0 0
  %519 = vmatpush1.bf16.msra.mxu0 0
  %520 = vmatprep.subr.bf16.mxu0 0
  %521 = vmatpush1.bf16.msra.mxu0 0
  %522 = vmatprep.subr.bf16.mxu0 0
  %523 = vmatpush1.bf16.msra.mxu0 0
  %524 = vmatprep.subr.bf16.mxu0 0
  %525 = vmatpush1.bf16.msra.mxu0 0
  %526 = vmatprep.subr.bf16.mxu0 0
  %527 = vmatpush1.bf16.msra.mxu0 0
  %528 = vmatprep.subr.bf16.mxu0 0
  %529 = vmatpush1.bf16.msra.mxu0 0
  %530 = vmatprep.subr.bf16.mxu0 0
  %531 = vmatpush1.bf16.msra.mxu0 0
  %532 = vmatprep.subr.bf16.mxu0 0
  %533 = vmatpush1.bf16.msra.mxu0 0
  %534 = vmatprep.subr.bf16.mxu0 0
  %535 = vmatpush1.bf16.msra.mxu0 0
  %536 = vmatprep.subr.bf16.mxu0 0
  %537 = vmatpush1.bf16.msra.mxu0 0
  %538 = vmatprep.subr.bf16.mxu0 0
  %539 = vmatpush1.bf16.msra.mxu0 0
  %540 = vmatprep.subr.bf16.mxu0 0
  %541 = vmatpush1.bf16.msra.mxu0 0
  %542 = vmatprep.subr.bf16.mxu0 0
  %543 = vmatpush1.bf16.msra.mxu0 0
  %544 = vmatprep.mubr.bf16.mxu0 0
  %545 = vmatmul.mubr.bf16.gmra.mrb[0].mxu0 %v510
  %v546 = vpop.f32.mrb[0].mxu0
  %v547 = vadd.f32 0.0, %v546
  %v548 = vpop.f32.mrb[0].mxu0
  %v549 = vpop.f32.mrb[0].mxu0
  %v550 = vadd.f32 0.0, %v549
  %v551 = vpop.f32.mrb[0].mxu0
  %552 = vdwg.mxu0
  %v553 = vpack.c.bf16 %v550, %v547
  %554 = vst [vmem:[#allocation2] sm:$0xff] %v553
  %555 = vst [vmem:[#allocation2 + $0x8] sm:$0xff] %v501
  %v556 = vld [vmem:[#allocation2] sm:$0xff]
  %v557 = vld [vmem:[#allocation2 + $0x8] sm:$0xff]
  %s558 = scalar_lea.vmem %s3, 256
  %v559 = vld [vmem:[%s558] sm:$0xf]
  %v560 = vld [vmem:[%s558 + $0x4] sm:$0xf]
  %v561 = vld [vmem:[%s558 + $0x8] sm:$0xf]
  %v562 = vld [vmem:[%s558 + $0xc] sm:$0xf]
  %v563 = vld [vmem:[%s558 + $0x10] sm:$0xf]
  %v564 = vld [vmem:[%s558 + $0x14] sm:$0xf]
  %v565 = vld [vmem:[%s558 + $0x18] sm:$0xf]
  %v566 = vld [vmem:[%s558 + $0x1c] sm:$0xf]
  %v567 = vld [vmem:[%s558 + $0x20] sm:$0xf]
  %v568 = vld [vmem:[%s558 + $0x24] sm:$0xf]
  %v569 = vld [vmem:[%s558 + $0x28] sm:$0xf]
  %v570 = vld [vmem:[%s558 + $0x2c] sm:$0xf]
  %v571 = vld [vmem:[%s558 + $0x30] sm:$0xf]
  %v572 = vld [vmem:[%s558 + $0x34] sm:$0xf]
  %v573 = vld [vmem:[%s558 + $0x38] sm:$0xf]
  %v574 = vld [vmem:[%s558 + $0x3c] sm:$0xf]
  %v575 = vld [vmem:[%s558 + $0x40] sm:$0xf]
  %v576 = vld [vmem:[%s558 + $0x44] sm:$0xf]
  %v577 = vld [vmem:[%s558 + $0x48] sm:$0xf]
  %v578 = vld [vmem:[%s558 + $0x4c] sm:$0xf]
  %v579 = vld [vmem:[%s558 + $0x50] sm:$0xf]
  %v580 = vld [vmem:[%s558 + $0x54] sm:$0xf]
  %v581 = vld [vmem:[%s558 + $0x58] sm:$0xf]
  %v582 = vld [vmem:[%s558 + $0x5c] sm:$0xf]
  %v583 = vld [vmem:[%s558 + $0x60] sm:$0xf]
  %v584 = vld [vmem:[%s558 + $0x64] sm:$0xf]
  %v585 = vld [vmem:[%s558 + $0x68] sm:$0xf]
  %v586 = vld [vmem:[%s558 + $0x6c] sm:$0xf]
  %v587 = vld [vmem:[%s558 + $0x70] sm:$0xf]
  %v588 = vld [vmem:[%s558 + $0x74] sm:$0xf]
  %v589 = vld [vmem:[%s558 + $0x78] sm:$0xf]
  %v590 = vld [vmem:[%s558 + $0x7c] sm:$0xf]
  %s591 = scalar_lea.vmem %s4, 2
  %v592 = vld [vmem:[%s591] sm:$0x1]
  %v594 = vlaneseq
  %v595 = vshrl.u32 %v594, 7
  %v596 = vsub.s32 0, %v595
  %v597 = vrot.slane %v592, %v596
  %v631 = vunpack.c.l.b16 %v559
  %v632 = vunpack.c.l.b16 %v560
  %v633 = vunpack.c.l.b16 %v561
  %v634 = vunpack.c.l.b16 %v562
  %v635 = vunpack.c.l.b16 %v563
  %v636 = vunpack.c.l.b16 %v564
  %v637 = vunpack.c.l.b16 %v565
  %v638 = vunpack.c.l.b16 %v566
  %v639 = vunpack.c.l.b16 %v567
  %v640 = vunpack.c.l.b16 %v568
  %v641 = vunpack.c.l.b16 %v569
  %v642 = vunpack.c.l.b16 %v570
  %v643 = vunpack.c.l.b16 %v571
  %v644 = vunpack.c.l.b16 %v572
  %v645 = vunpack.c.l.b16 %v573
  %v646 = vunpack.c.l.b16 %v574
  %v647 = vunpack.c.l.b16 %v575
  %v648 = vunpack.c.l.b16 %v576
  %v649 = vunpack.c.l.b16 %v577
  %v650 = vunpack.c.l.b16 %v578
  %v651 = vunpack.c.l.b16 %v579
  %v652 = vunpack.c.l.b16 %v580
  %v653 = vunpack.c.l.b16 %v581
  %v654 = vunpack.c.l.b16 %v582
  %v655 = vunpack.c.l.b16 %v583
  %v656 = vunpack.c.l.b16 %v584
  %v657 = vunpack.c.l.b16 %v585
  %v658 = vunpack.c.l.b16 %v586
  %v659 = vunpack.c.l.b16 %v587
  %v660 = vunpack.c.l.b16 %v588
  %v661 = vunpack.c.l.b16 %v589
  %v662 = vunpack.c.l.b16 %v590
  %v663 = vpack.c.b16 %v632, %v631
  %v664 = vpack.c.b16 %v634, %v633
  %v665 = vpack.c.b16 %v636, %v635
  %v666 = vpack.c.b16 %v638, %v637
  %v667 = vpack.c.b16 %v640, %v639
  %v668 = vpack.c.b16 %v642, %v641
  %v669 = vpack.c.b16 %v644, %v643
  %v670 = vpack.c.b16 %v646, %v645
  %v671 = vpack.c.b16 %v648, %v647
  %v672 = vpack.c.b16 %v650, %v649
  %v673 = vpack.c.b16 %v652, %v651
  %v674 = vpack.c.b16 %v654, %v653
  %v675 = vpack.c.b16 %v656, %v655
  %v676 = vpack.c.b16 %v658, %v657
  %v677 = vpack.c.b16 %v660, %v659
  %v678 = vpack.c.b16 %v662, %v661
  %695 = vmatprep.subr.bf16.mxu0 0
  %696 = vmatpush1.bf16.msra.mxu0 %v663
  %697 = vmatprep.subr.bf16.mxu0 0
  %698 = vmatpush1.bf16.msra.mxu0 %v664
  %699 = vmatprep.subr.bf16.mxu0 0
  %700 = vmatpush1.bf16.msra.mxu0 %v665
  %701 = vmatprep.subr.bf16.mxu0 0
  %702 = vmatpush1.bf16.msra.mxu0 %v666
  %703 = vmatprep.subr.bf16.mxu0 0
  %704 = vmatpush1.bf16.msra.mxu0 %v667
  %705 = vmatprep.subr.bf16.mxu0 0
  %706 = vmatpush1.bf16.msra.mxu0 %v668
  %707 = vmatprep.subr.bf16.mxu0 0
  %708 = vmatpush1.bf16.msra.mxu0 %v669
  %709 = vmatprep.subr.bf16.mxu0 0
  %710 = vmatpush1.bf16.msra.mxu0 %v670
  %711 = vmatprep.subr.bf16.mxu0 0
  %712 = vmatpush1.bf16.msra.mxu0 %v671
  %713 = vmatprep.subr.bf16.mxu0 0
  %714 = vmatpush1.bf16.msra.mxu0 %v672
  %715 = vmatprep.subr.bf16.mxu0 0
  %716 = vmatpush1.bf16.msra.mxu0 %v673
  %717 = vmatprep.subr.bf16.mxu0 0
  %718 = vmatpush1.bf16.msra.mxu0 %v674
  %719 = vmatprep.subr.bf16.mxu0 0
  %720 = vmatpush1.bf16.msra.mxu0 %v675
  %721 = vmatprep.subr.bf16.mxu0 0
  %722 = vmatpush1.bf16.msra.mxu0 %v676
  %723 = vmatprep.subr.bf16.mxu0 0
  %724 = vmatpush1.bf16.msra.mxu0 %v677
  %725 = vmatprep.subr.bf16.mxu0 0
  %726 = vmatpush1.bf16.msra.mxu0 %v678
  %727 = vmatprep.mubr.bf16.mxu0 %v557
  %728 = vmatmul.mubr.bf16.gmra.mrb[0].mxu0 %v556
  %v729 = vpop.f32.mrb[0].mxu0
  %v730 = vadd.f32 %v597, %v729
  %v731 = vpop.f32.mrb[0].mxu0
  %v732 = vpop.f32.mrb[0].mxu0
  %v733 = vadd.f32 %v597, %v732
  %v734 = vpop.f32.mrb[0].mxu0
  %735 = vdwg.mxu0
  %v736 = vmax.f32 %v730, 0.0
  %v737 = vmax.f32 %v733, 0.0
  %v738 = vpack.c.bf16 %v737, %v736
  %v739 = vld [vmem:[%s0] sm:$0xf]
  %v740 = vld [vmem:[%s0 + $0x4] sm:$0xf]
  %v743 = vunpack.c.l.b16 %v739
  %v744 = vunpack.c.l.b16 %v740
  %v745 = vpack.c.b16 %v744, %v743
  %v747 = vsel %vm36, %v745, 0
  %749 = vmatprep.subr.bf16.mxu0 0
  %750 = vmatpush1.bf16.msra.mxu0 %v738
  %751 = vmatprep.subr.bf16.mxu0 0
  %752 = vmatpush1.bf16.msra.mxu0 0
  %753 = vmatprep.subr.bf16.mxu0 0
  %754 = vmatpush1.bf16.msra.mxu0 0
  %755 = vmatprep.subr.bf16.mxu0 0
  %756 = vmatpush1.bf16.msra.mxu0 0
  %757 = vmatprep.subr.bf16.mxu0 0
  %758 = vmatpush1.bf16.msra.mxu0 0
  %759 = vmatprep.subr.bf16.mxu0 0
  %760 = vmatpush1.bf16.msra.mxu0 0
  %761 = vmatprep.subr.bf16.mxu0 0
  %762 = vmatpush1.bf16.msra.mxu0 0
  %763 = vmatprep.subr.bf16.mxu0 0
  %764 = vmatpush1.bf16.msra.mxu0 0
  %765 = vmatprep.subr.bf16.mxu0 0
  %766 = vmatpush1.bf16.msra.mxu0 0
  %767 = vmatprep.subr.bf16.mxu0 0
  %768 = vmatpush1.bf16.msra.mxu0 0
  %769 = vmatprep.subr.bf16.mxu0 0
  %770 = vmatpush1.bf16.msra.mxu0 0
  %771 = vmatprep.subr.bf16.mxu0 0
  %772 = vmatpush1.bf16.msra.mxu0 0
  %773 = vmatprep.subr.bf16.mxu0 0
  %774 = vmatpush1.bf16.msra.mxu0 0
  %775 = vmatprep.subr.bf16.mxu0 0
  %776 = vmatpush1.bf16.msra.mxu0 0
  %777 = vmatprep.subr.bf16.mxu0 0
  %778 = vmatpush1.bf16.msra.mxu0 0
  %779 = vmatprep.subr.bf16.mxu0 0
  %780 = vmatpush1.bf16.msra.mxu0 0
  %781 = vmatprep.mubr.bf16.mxu0 0
  %782 = vmatmul.mubr.bf16.gmra.mrb[0].mxu0 %v747
  %v783 = vpop.f32.mrb[0].mxu0
  %v784 = vadd.f32 0.0, %v783
  %v785 = vpop.f32.mrb[0].mxu0
  %v786 = vpop.f32.mrb[0].mxu0
  %v787 = vadd.f32 0.0, %v786
  %v788 = vpop.f32.mrb[0].mxu0
  %789 = vdwg.mxu0
  %v790 = vpack.c.bf16 %v787, %v784
  %791 = vst [vmem:[#allocation2] sm:$0xff] %v790
  %792 = vst [vmem:[#allocation2 + $0x8] sm:$0xff] %v738
  %v793 = vld [vmem:[%s2] sm:$0xf]
  %v794 = vld [vmem:[#allocation2] sm:$0xff]
  %v795 = vld [vmem:[#allocation2 + $0x8] sm:$0xff]
  %v797 = vsel %vm36, %v793, 0
  %799 = vmatprep.subr.bf16.mxu0 %v795
  %800 = vmatpush1.bf16.msra.mxu0 %v794
  %801 = vmatprep.subr.bf16.mxu0 0
  %802 = vmatpush1.bf16.msra.mxu0 0
  %803 = vmatprep.subr.bf16.mxu0 0
  %804 = vmatpush1.bf16.msra.mxu0 0
  %805 = vmatprep.subr.bf16.mxu0 0
  %806 = vmatpush1.bf16.msra.mxu0 0
  %807 = vmatprep.subr.bf16.mxu0 0
  %808 = vmatpush1.bf16.msra.mxu0 0
  %809 = vmatprep.subr.bf16.mxu0 0
  %810 = vmatpush1.bf16.msra.mxu0 0
  %811 = vmatprep.subr.bf16.mxu0 0
  %812 = vmatpush1.bf16.msra.mxu0 0
  %813 = vmatprep.subr.bf16.mxu0 0
  %814 = vmatpush1.bf16.msra.mxu0 0
  %815 = vmatprep.subr.bf16.mxu0 0
  %816 = vmatpush1.bf16.msra.mxu0 0
  %817 = vmatprep.subr.bf16.mxu0 0
  %818 = vmatpush1.bf16.msra.mxu0 0
  %819 = vmatprep.subr.bf16.mxu0 0
  %820 = vmatpush1.bf16.msra.mxu0 0
  %821 = vmatprep.subr.bf16.mxu0 0
  %822 = vmatpush1.bf16.msra.mxu0 0
  %823 = vmatprep.subr.bf16.mxu0 0
  %824 = vmatpush1.bf16.msra.mxu0 0
  %825 = vmatprep.subr.bf16.mxu0 0
  %826 = vmatpush1.bf16.msra.mxu0 0
  %827 = vmatprep.subr.bf16.mxu0 0
  %828 = vmatpush1.bf16.msra.mxu0 0
  %829 = vmatprep.subr.bf16.mxu0 0
  %830 = vmatpush1.bf16.msra.mxu0 0
  %831 = vmatprep.mubr.bf16.mxu0 0
  %832 = vmatmul.mubr.bf16.gmra.mrb[0].mxu0 %v797
  %v833 = vpop.f32.mrb[0].mxu0
  %v834 = vadd.f32 0.0, %v833
  %v835 = vpop.f32.mrb[0].mxu0
  %v836 = vadd.f32 0.0, %v835
  %v837 = vpop.f32.mrb[0].mxu0
  %v838 = vpop.f32.mrb[0].mxu0
  %839 = vdwg.mxu0
  %v840 = vpack.c.bf16 %v834, %v834
  %v841 = vpack.c.bf16 %v836, %v836
  %s842 = scalar_lea.vmem %s3, 384
  %v843 = vld [vmem:[%s842] sm:$0xf]
  %v844 = vld [vmem:[%s842 + $0x4] sm:$0xf]
  %v845 = vld [vmem:[%s842 + $0x8] sm:$0xf]
  %v846 = vld [vmem:[%s842 + $0xc] sm:$0xf]
  %v847 = vld [vmem:[%s842 + $0x10] sm:$0xf]
  %v848 = vld [vmem:[%s842 + $0x14] sm:$0xf]
  %v849 = vld [vmem:[%s842 + $0x18] sm:$0xf]
  %v850 = vld [vmem:[%s842 + $0x1c] sm:$0xf]
  %v851 = vld [vmem:[%s842 + $0x20] sm:$0xf]
  %v852 = vld [vmem:[%s842 + $0x24] sm:$0xf]
  %v853 = vld [vmem:[%s842 + $0x28] sm:$0xf]
  %v854 = vld [vmem:[%s842 + $0x2c] sm:$0xf]
  %v855 = vld [vmem:[%s842 + $0x30] sm:$0xf]
  %v856 = vld [vmem:[%s842 + $0x34] sm:$0xf]
  %v857 = vld [vmem:[%s842 + $0x38] sm:$0xf]
  %v858 = vld [vmem:[%s842 + $0x3c] sm:$0xf]
  %v859 = vld [vmem:[%s842 + $0x40] sm:$0xf]
  %v860 = vld [vmem:[%s842 + $0x44] sm:$0xf]
  %v861 = vld [vmem:[%s842 + $0x48] sm:$0xf]
  %v862 = vld [vmem:[%s842 + $0x4c] sm:$0xf]
  %v863 = vld [vmem:[%s842 + $0x50] sm:$0xf]
  %v864 = vld [vmem:[%s842 + $0x54] sm:$0xf]
  %v865 = vld [vmem:[%s842 + $0x58] sm:$0xf]
  %v866 = vld [vmem:[%s842 + $0x5c] sm:$0xf]
  %v867 = vld [vmem:[%s842 + $0x60] sm:$0xf]
  %v868 = vld [vmem:[%s842 + $0x64] sm:$0xf]
  %v869 = vld [vmem:[%s842 + $0x68] sm:$0xf]
  %v870 = vld [vmem:[%s842 + $0x6c] sm:$0xf]
  %v871 = vld [vmem:[%s842 + $0x70] sm:$0xf]
  %v872 = vld [vmem:[%s842 + $0x74] sm:$0xf]
  %v873 = vld [vmem:[%s842 + $0x78] sm:$0xf]
  %v874 = vld [vmem:[%s842 + $0x7c] sm:$0xf]
  %s875 = scalar_lea.vmem %s4, 3
  %v876 = vld [vmem:[%s875] sm:$0x1]
  %v878 = vlaneseq
  %v879 = vshrl.u32 %v878, 7
  %v880 = vsub.s32 0, %v879
  %v881 = vrot.slane %v876, %v880
  %v915 = vunpack.c.l.b16 %v843
  %v916 = vunpack.c.l.b16 %v844
  %v917 = vunpack.c.l.b16 %v845
  %v918 = vunpack.c.l.b16 %v846
  %v919 = vunpack.c.l.b16 %v847
  %v920 = vunpack.c.l.b16 %v848
  %v921 = vunpack.c.l.b16 %v849
  %v922 = vunpack.c.l.b16 %v850
  %v923 = vunpack.c.l.b16 %v851
  %v924 = vunpack.c.l.b16 %v852
  %v925 = vunpack.c.l.b16 %v853
  %v926 = vunpack.c.l.b16 %v854
  %v927 = vunpack.c.l.b16 %v855
  %v928 = vunpack.c.l.b16 %v856
  %v929 = vunpack.c.l.b16 %v857
  %v930 = vunpack.c.l.b16 %v858
  %v931 = vunpack.c.l.b16 %v859
  %v932 = vunpack.c.l.b16 %v860
  %v933 = vunpack.c.l.b16 %v861
  %v934 = vunpack.c.l.b16 %v862
  %v935 = vunpack.c.l.b16 %v863
  %v936 = vunpack.c.l.b16 %v864
  %v937 = vunpack.c.l.b16 %v865
  %v938 = vunpack.c.l.b16 %v866
  %v939 = vunpack.c.l.b16 %v867
  %v940 = vunpack.c.l.b16 %v868
  %v941 = vunpack.c.l.b16 %v869
  %v942 = vunpack.c.l.b16 %v870
  %v943 = vunpack.c.l.b16 %v871
  %v944 = vunpack.c.l.b16 %v872
  %v945 = vunpack.c.l.b16 %v873
  %v946 = vunpack.c.l.b16 %v874
  %v947 = vpack.c.b16 %v916, %v915
  %v948 = vpack.c.b16 %v918, %v917
  %v949 = vpack.c.b16 %v920, %v919
  %v950 = vpack.c.b16 %v922, %v921
  %v951 = vpack.c.b16 %v924, %v923
  %v952 = vpack.c.b16 %v926, %v925
  %v953 = vpack.c.b16 %v928, %v927
  %v954 = vpack.c.b16 %v930, %v929
  %v955 = vpack.c.b16 %v932, %v931
  %v956 = vpack.c.b16 %v934, %v933
  %v957 = vpack.c.b16 %v936, %v935
  %v958 = vpack.c.b16 %v938, %v937
  %v959 = vpack.c.b16 %v940, %v939
  %v960 = vpack.c.b16 %v942, %v941
  %v961 = vpack.c.b16 %v944, %v943
  %v962 = vpack.c.b16 %v946, %v945
  %979 = vmatprep.subr.bf16.mxu0 0
  %980 = vmatpush1.bf16.msra.mxu0 %v947
  %981 = vmatprep.subr.bf16.mxu0 0
  %982 = vmatpush1.bf16.msra.mxu0 %v948
  %983 = vmatprep.subr.bf16.mxu0 0
  %984 = vmatpush1.bf16.msra.mxu0 %v949
  %985 = vmatprep.subr.bf16.mxu0 0
  %986 = vmatpush1.bf16.msra.mxu0 %v950
  %987 = vmatprep.subr.bf16.mxu0 0
  %988 = vmatpush1.bf16.msra.mxu0 %v951
  %989 = vmatprep.subr.bf16.mxu0 0
  %990 = vmatpush1.bf16.msra.mxu0 %v952
  %991 = vmatprep.subr.bf16.mxu0 0
  %992 = vmatpush1.bf16.msra.mxu0 %v953
  %993 = vmatprep.subr.bf16.mxu0 0
  %994 = vmatpush1.bf16.msra.mxu0 %v954
  %995 = vmatprep.subr.bf16.mxu0 0
  %996 = vmatpush1.bf16.msra.mxu0 %v955
  %997 = vmatprep.subr.bf16.mxu0 0
  %998 = vmatpush1.bf16.msra.mxu0 %v956
  %999 = vmatprep.subr.bf16.mxu0 0
  %1000 = vmatpush1.bf16.msra.mxu0 %v957
  %1001 = vmatprep.subr.bf16.mxu0 0
  %1002 = vmatpush1.bf16.msra.mxu0 %v958
  %1003 = vmatprep.subr.bf16.mxu0 0
  %1004 = vmatpush1.bf16.msra.mxu0 %v959
  %1005 = vmatprep.subr.bf16.mxu0 0
  %1006 = vmatpush1.bf16.msra.mxu0 %v960
  %1007 = vmatprep.subr.bf16.mxu0 0
  %1008 = vmatpush1.bf16.msra.mxu0 %v961
  %1009 = vmatprep.subr.bf16.mxu0 0
  %1010 = vmatpush1.bf16.msra.mxu0 %v962
  %1011 = vmatprep.mubr.bf16.mxu0 %v841
  %1012 = vmatmul.mubr.bf16.gmra.mrb[0].mxu0 %v840
  %v1013 = vpop.f32.mrb[0].mxu0
  %v1014 = vadd.f32 %v881, %v1013
  %v1015 = vpop.f32.mrb[0].mxu0
  %v1016 = vpop.f32.mrb[0].mxu0
  %v1017 = vpop.f32.mrb[0].mxu0
  %1018 = vdwg.mxu0
  %1019 = vst [vmem:[%s5] sm:$0xff] %v1014
  // Predicated region
  $region22: #{baseline_forward.1} parent=0 // pred_check
    _
  $region23: #{baseline_forward.1} parent=0 // pred_check_branch
    %1021 = sbr.rel (0) target = $region25
  $region24: #{baseline_forward.1} parent=0 // pred_region
    _
  $region25: #{baseline_forward.1} parent=0 // pred_fallthru
    _
  // Predicated region
  $region26: #{baseline_forward.1} parent=0 // pred_check
    _
  $region27: #{baseline_forward.1} parent=0 // pred_check_branch
    %1023 = sbr.rel (0) target = $region29
  $region28: #{baseline_forward.1} parent=0 // pred_region
    _
  $region29: #{baseline_forward.1} parent=0 // pred_fallthru
    _

</llo_original>
